<compile_context>
chip_gen: v5e
topology: v5e:2x2
jax: 0.10.0
libtpu: 0.0.40
codegen_flags: <defaults>
</compile_context>

<pallas_src>
import jax
import jax.numpy as jnp
from jax import lax
from jax.experimental import pallas as pl
from jax.experimental.pallas import tpu as pltpu

_ACC_ROWS = 8  # sublane group size; every row tile is a multiple of 8


def _cdiv(a, b):
    return -(-a // b)


def _divisors(q):
    out = set()
    i = 1
    while i * i <= q:
        if q % i == 0:
            out.add(i)
            out.add(q // i)
        i += 1
    return sorted(out)


def _sq_diff_groups(x_ref, p_ref, acc_init):
    """Element-wise sum of (x - p)^2 over 8-row groups of the current tile.

    Loops over 8-row groups so live values stay at a few vregs per iteration
    (2 loads + sub/mul/add per vreg) instead of full-tile f32 temporaries.
    """
    tile_rows = x_ref.shape[0]
    n_groups = tile_rows // _ACC_ROWS

    def body(g, acc):
        r = pl.multiple_of(g * _ACC_ROWS, _ACC_ROWS)
        xg = x_ref[pl.ds(r, _ACC_ROWS), :].astype(jnp.float32)
        pg = p_ref[pl.ds(r, _ACC_ROWS), :].astype(jnp.float32)
        d = xg - pg
        return acc + d * d

    return lax.fori_loop(0, n_groups, body, acc_init)


def _mse_kernel_resident(x_ref, p_ref, acc_ref):
    """Single resident (8, lane) accumulator; grid axis is 'arbitrary' (single TC)."""
    @pl.when(pl.program_id(0) == 0)
    def _():
        acc_ref[...] = jnp.zeros_like(acc_ref)

    acc_ref[...] = _sq_diff_groups(x_ref, p_ref, acc_ref[...])


def _mse_kernel_blocked(x_ref, p_ref, psum_ref):
    """Per-grid-step (8, lane) partial sums; grid axis is 'parallel' (dual TC)."""
    psum_ref[...] = _sq_diff_groups(
        x_ref, p_ref, jnp.zeros(psum_ref.shape, jnp.float32))


def _tpu_config():
    """Return (max_tile_bytes per streamed buffer, multi_core) for this chip."""
    vmem_cap = None
    try:
        vmem_cap = int(pltpu.get_tpu_info().vmem_capacity_bytes)
    except Exception:
        vmem_cap = None
    kind = ""
    try:
        kind = jax.devices()[0].device_kind.lower()
    except Exception:
        pass
    is_v7 = ("v7" in kind) or ("7x" in kind)
    if vmem_cap is None:
        vmem_cap = (64 << 20) if is_v7 else (128 << 20)

    if is_v7 or vmem_cap <= (64 << 20) + (1 << 20):
        max_tile_bytes = 8 << 20     # v7x: 2x2x8 MiB = 32 MiB, fits 64 MiB VMEM
    elif "v6" in kind:
        max_tile_bytes = 16 << 20    # v6e: 128 MiB VMEM, amortize per-step overhead
    else:
        max_tile_bytes = 8 << 20     # v5e / unknown: already DMA-bound at 8 MiB
    # Hard safety: 2 inputs x 2 buffers + 8 MiB headroom must fit the chip.
    max_tile_bytes = min(max_tile_bytes, max(1 << 20, (vmem_cap - (8 << 20)) // 4))
    return max_tile_bytes, is_v7


def content_layer_forward(x, p, *, max_lane=1024, max_tile_bytes=None,
                          multi_core=None):
    """Returns (y, loss) where y is x (identity) and loss == mean((x - p)**2)."""
    assert x.shape == p.shape, "x and p must have the same shape"

    auto_tile_bytes, auto_multi = _tpu_config()
    if max_tile_bytes is None:
        max_tile_bytes = auto_tile_bytes
    if multi_core is None:
        multi_core = auto_multi
    max_lane = max(128, max_lane - max_lane % 128)

    n = 1
    for s in x.shape:
        n *= int(s)

    # ---- (rows, lane) layout: lane % 128 == 0, rows % 8 == 0 -------------------
    lane = 0
    if n % 128 == 0:
        cand = min(max_lane, n)
        cand -= cand % 128
        while cand >= 128:
            if n % cand == 0 and (n // cand) % _ACC_ROWS == 0:
                lane = cand
                break
            cand -= 128
    if lane:
        rows = n // lane
        x2 = x.reshape(rows, lane)
        p2 = p.reshape(rows, lane)
    else:
        # Awkward size: one-time zero-pad (zeros contribute 0 to the squared error;
        # the mean below still divides by the true element count n).
        lane = min(max_lane, 128 * _cdiv(n, _ACC_ROWS * 128))
        rows = _ACC_ROWS * _cdiv(n, _ACC_ROWS * lane)
        pad = rows * lane - n
        x2 = jnp.pad(x.reshape(-1), (0, pad)).reshape(rows, lane)
        p2 = jnp.pad(p.reshape(-1), (0, pad)).reshape(rows, lane)

    itemsize = max(jnp.dtype(x.dtype).itemsize, jnp.dtype(p.dtype).itemsize)

    # ---- tile_rows: largest multiple-of-8 divisor of rows under the byte cap ----
    q = rows // _ACC_ROWS
    max_tile_rows = max(_ACC_ROWS,
                        (max_tile_bytes // (lane * itemsize))
                        // _ACC_ROWS * _ACC_ROWS)
    cands = [t for t in _divisors(q) if _ACC_ROWS * t <= max_tile_rows] or [1]
    min_grid = 2 if (multi_core and q >= 2) else 1
    ok = [t for t in cands if q // t >= min_grid] or cands
    if multi_core:
        even = [t for t in ok if (q // t) % 2 == 0]
        if even:
            ok = even
    tile_q = max(ok)
    tile_rows = _ACC_ROWS * tile_q
    grid_n = rows // tile_rows

    # ---- VMEM budget: never below what the chosen tiling actually needs --------
    tile_bytes = tile_rows * lane * itemsize
    acc_bytes = _ACC_ROWS * lane * 4
    needed = 2 * 2 * tile_bytes + 2 * acc_bytes + (2 << 20)
    vmem_limit_bytes = int(max(needed, 32 << 20))

    in_specs = [pl.BlockSpec((tile_rows, lane), lambda i: (i, 0)),
                pl.BlockSpec((tile_rows, lane), lambda i: (i, 0))]

    if multi_core:
        # Dual-TC (v7x): each step writes its own partial block; 'parallel' grid
        # lets both TensorCores share the bandwidth-bound stream.
        partials = pl.pallas_call(
            _mse_kernel_blocked,
            out_shape=jax.ShapeDtypeStruct((grid_n * _ACC_ROWS, lane), jnp.float32),
            grid_spec=pltpu.PrefetchScalarGridSpec(
                num_scalar_prefetch=0,
                grid=(grid_n,),
                in_specs=in_specs,
                out_specs=pl.BlockSpec((_ACC_ROWS, lane), lambda i: (i, 0)),
            ),
            compiler_params=pltpu.CompilerParams(
                dimension_semantics=("parallel",),
                vmem_limit_bytes=vmem_limit_bytes,
            ),
        )(x2, p2)
    else:
        # Single-TC (v5e/v6e): resident accumulator, written back to HBM once.
        partials = pl.pallas_call(
            _mse_kernel_resident,
            out_shape=jax.ShapeDtypeStruct((_ACC_ROWS, lane), jnp.float32),
            grid_spec=pltpu.PrefetchScalarGridSpec(
                num_scalar_prefetch=0,
                grid=(grid_n,),
                in_specs=in_specs,
                out_specs=pl.BlockSpec((_ACC_ROWS, lane), lambda i: (0, 0)),
            ),
            compiler_params=pltpu.CompilerParams(
                dimension_semantics=("arbitrary",),
                vmem_limit_bytes=vmem_limit_bytes,
            ),
        )(x2, p2)

    # Tiny final reduction + mean in plain JAX.
    loss = jnp.sum(partials) / jnp.float32(n)

    # Identity passthrough: return x itself (no extra HBM writeback scheduled).
    return x, loss


if __name__ == "__main__":
    key = jax.random.PRNGKey(0)
    k = jax.random.split(key, 8)

    # 1) Small NCHW shape consistent with the module's use in NST (auto config).
    x = jax.random.normal(k[0], (2, 4, 16, 16), dtype=jnp.float32)
    p = jax.random.normal(k[1], (2, 4, 16, 16), dtype=jnp.float32)
    y, loss = content_layer_forward(x, p)
    jax.block_until_ready((y, loss))
    ref = jnp.mean((x - p) ** 2)
    assert jnp.allclose(y, x), "passthrough mismatch"
    assert jnp.allclose(loss, ref, rtol=1e-5, atol=1e-6), (loss, ref)

    # 2) Multi-step grid, per-step-partials path (dual-TC / v7x style layout).
    x2 = jax.random.normal(k[2], (2, 8, 32, 32), dtype=jnp.float32)
    p2 = jax.random.normal(k[3], (2, 8, 32, 32), dtype=jnp.float32)
    y2, loss2 = content_layer_forward(x2, p2, max_lane=512,
                                      max_tile_bytes=8 * 512 * 4,
                                      multi_core=True)
    jax.block_until_ready((y2, loss2))
    ref2 = jnp.mean((x2 - p2) ** 2)
    assert jnp.allclose(y2, x2), "passthrough mismatch (blocked path)"
    assert jnp.allclose(loss2, ref2, rtol=1e-5, atol=1e-6), (loss2, ref2)

    # 3) Multi-step grid, resident-accumulator path (v5e/v6e style layout).
    y3, loss3 = content_layer_forward(x2, p2, max_lane=512,
                                      max_tile_bytes=8 * 512 * 4,
                                      multi_core=False)
    jax.block_until_ready((y3, loss3))
    assert jnp.allclose(y3, x2), "passthrough mismatch (resident path)"
    assert jnp.allclose(loss3, ref2, rtol=1e-5, atol=1e-6), (loss3, ref2)

    # 4) Awkward element count (not a multiple of 128) exercises the pad fallback.
    x4 = jax.random.normal(k[4], (2, 3, 5, 7), dtype=jnp.float32)
    p4 = jax.random.normal(k[5], (2, 3, 5, 7), dtype=jnp.float32)
    y4, loss4 = content_layer_forward(x4, p4)
    jax.block_until_ready((y4, loss4))
    ref4 = jnp.mean((x4 - p4) ** 2)
    assert jnp.allclose(y4, x4), "passthrough mismatch (pad path)"
    assert jnp.allclose(loss4, ref4, rtol=1e-5, atol=1e-6), (loss4, ref4)

    print("KERNEL_OK")
</pallas_src>

<mosaic_0001>
module attributes {stable_mosaic.version = 11 : i64} {
  func.func @_mse_kernel_resident(%arg0: i32, %arg1: memref<8x256xf32, #tpu.memory_space<vmem>>, %arg2: memref<8x256xf32, #tpu.memory_space<vmem>>, %arg3: memref<8x256xf32, #tpu.memory_space<vmem>>) attributes {dimension_semantics = [#tpu.dimension_semantics<arbitrary>], iteration_bounds = array<i64: 1>, scalar_prefetch = 0 : i64, scratch_operands = 0 : i64, tpu.core_type = #tpu.core_type<tc>, window_params = [{transform_indices = @transform_0, window_bounds = array<i64: 8, 256>}, {transform_indices = @transform_1, window_bounds = array<i64: 8, 256>}, {pipeline_mode = #tpu.pipeline_mode<synchronous>, transform_indices = @transform_2, window_bounds = array<i64: 8, 256>}]} {
    %c0_i32 = arith.constant 0 : i32
    %0 = arith.cmpi eq, %arg0, %c0_i32 : i32
    %1 = arith.extui %0 : i1 to i32
    %c0_i32_0 = arith.constant 0 : i32
    %2 = arith.cmpi ne, %1, %c0_i32_0 : i32
    scf.if %2 {
      %cst = arith.constant 0.000000e+00 : f32
      %14 = vector.broadcast %cst : f32 to vector<8x256xf32>
      %c0_7 = arith.constant 0 : index
      %c0_8 = arith.constant 0 : index
      %15 = vector.load %arg3[%c0_7, %c0_8] : memref<8x256xf32, #tpu.memory_space<vmem>>, vector<8x256xf32>
      tpu.vector_store %arg3[%c0_7, %c0_8], %14 {strides = array<i32>} : memref<8x256xf32, #tpu.memory_space<vmem>>, vector<8x256xf32>,
    } else {
    }
    %c0 = arith.constant 0 : index
    %c0_1 = arith.constant 0 : index
    %3 = vector.load %arg3[%c0, %c0_1] : memref<8x256xf32, #tpu.memory_space<vmem>>, vector<8x256xf32>
    %c0_i32_2 = arith.constant 0 : i32
    %c8_i32 = arith.constant 8 : i32
    %4 = arith.muli %c0_i32_2, %c8_i32 : i32
    %5 = tpu.assume_multiple %4, 8 : i32
    %6 = arith.index_cast %5 : i32 to index
    %c0_3 = arith.constant 0 : index
    %7 = vector.load %arg1[%6, %c0_3] : memref<8x256xf32, #tpu.memory_space<vmem>>, vector<8x256xf32>
    %8 = arith.index_cast %5 : i32 to index
    %c0_4 = arith.constant 0 : index
    %9 = vector.load %arg2[%8, %c0_4] : memref<8x256xf32, #tpu.memory_space<vmem>>, vector<8x256xf32>
    %10 = arith.subf %7, %9 : vector<8x256xf32>
    %11 = arith.mulf %10, %10 : vector<8x256xf32>
    %12 = arith.addf %3, %11 : vector<8x256xf32>
    %c1_i32 = arith.constant 1 : i32
    %c0_5 = arith.constant 0 : index
    %c0_6 = arith.constant 0 : index
    %13 = vector.load %arg3[%c0_5, %c0_6] : memref<8x256xf32, #tpu.memory_space<vmem>>, vector<8x256xf32>
    tpu.vector_store %arg3[%c0_5, %c0_6], %12 {strides = array<i32>} : memref<8x256xf32, #tpu.memory_space<vmem>>, vector<8x256xf32>,
    return
  }
  func.func @transform_0(%arg0: i32) -> (i32, i32) {
    %c0_i32 = arith.constant 0 : i32
    %c0_i32_0 = arith.constant 0 : i32
    return %arg0, %c0_i32 : i32, i32
  }
  func.func @transform_1(%arg0: i32) -> (i32, i32) {
    %c0_i32 = arith.constant 0 : i32
    %c0_i32_0 = arith.constant 0 : i32
    return %arg0, %c0_i32 : i32, i32
  }
  func.func @transform_2(%arg0: i32) -> (i32, i32) {
    %c0_i32 = arith.constant 0 : i32
    %c0_i32_0 = arith.constant 0 : i32
    %c0_i32_1 = arith.constant 0 : i32
    return %c0_i32, %c0_i32_0 : i32, i32
  }
}

</mosaic_0001>

<llo_original>
// kernel: tpu_custom_call.1
$region0: #{tpu_custom_call.1}
  #allocation0 [shape = 'u32[]', space=smem, size = 0x4, offset = 0x4, fixed_abs, tag = 'smem constant byte address 0x4 - core index']
  #allocation1 [shape = 'u32[72,128]{1,0:T(1,128)}', space=vmem, size = 0x9000, scoped, tag = 'internal scratch']
  %s0 = inlined_call_operand.hbm [shape: f32[8,256], index: 0, kind: input, shape index: {}]
  %s1 = inlined_call_operand.hbm [shape: f32[8,256], index: 1, kind: input, shape index: {}]
  %s2 = inlined_call_operand.hbm [shape: f32[8,256], index: 2, kind: output, shape index: {}]
  %s3 = sld [smem:[#allocation0]]
  $region30: #{tpu_custom_call.1} parent=0
    _
  %s5 = ssub.s32 1, %s3
  %s6 = scalar_select 0, %s5, %s3
  $region1: #{tpu_custom_call.1} parent=0
    #allocation2 [shape = 'u8[8192]{0}', space=vmem, size = 0x2000, scoped, tag = 'input window, operand 0, single buffered']
    #allocation3 [shape = 's32[1]{0}', space=sflag, size = 0x4, scoped, tag = 'scoped memory for tpu_custom_call.1']
    #allocation4 [shape = 's32[1]{0}', space=sflag, size = 0x4, scoped, tag = 'scoped memory for tpu_custom_call.1']
    #allocation5 [shape = 'u8[8192]{0}', space=vmem, size = 0x2000, scoped, tag = 'input window, operand 1, single buffered']
    #allocation6 [shape = 's32[1]{0}', space=sflag, size = 0x4, scoped, tag = 'scoped memory for tpu_custom_call.1']
    #allocation7 [shape = 'u8[8192]{0}', space=vmem, size = 0x2000, scoped, tag = 'output window, operand 0, single buffered']
    %7 = vsyncpa [#allocation3], 0
    %8 = vsyncpa [#allocation6], 0
    %9 = vsyncpa [#allocation4], 0
    // Predicated region
    $region2: #{tpu_custom_call.1} parent=1 // pred_check
      _
    $region3: #{tpu_custom_call.1} parent=1 // pred_check_branch
      %11 = sbr.rel (0) target = $region5
    $region4: #{tpu_custom_call.1} parent=1 // pred_region
      %13 = vsyncadd [#allocation3], 0
      %s15 = sshll.u32 %s0, 4
      %s16 = int_to_ptr.hbm [resolvable:$true] %s15
      %s17 = sshll.u32 [#allocation2], 4
      %s18 = int_to_ptr.vmem [resolvable:$true] %s17
      %20 = dma.hbm_to_vmem [thread:$0]  %s16, 256, %s18, [#allocation3]
    $region5: #{tpu_custom_call.1} parent=1 // pred_fallthru
      _
    // Predicated region
    $region6: #{tpu_custom_call.1} parent=1 // pred_check
      _
    $region7: #{tpu_custom_call.1} parent=1 // pred_check_branch
      %22 = sbr.rel (0) target = $region9
    $region8: #{tpu_custom_call.1} parent=1 // pred_region
      %24 = vsyncadd [#allocation6], 0
      %s26 = sshll.u32 %s1, 4
      %s27 = int_to_ptr.hbm [resolvable:$true] %s26
      %s28 = sshll.u32 [#allocation5], 4
      %s29 = int_to_ptr.vmem [resolvable:$true] %s28
      %31 = dma.hbm_to_vmem [thread:$0]  %s27, 256, %s29, [#allocation6]
    $region9: #{tpu_custom_call.1} parent=1 // pred_fallthru
      _
    // Predicated region
    $region10: #{tpu_custom_call.1} parent=1 // pred_check
      _
    $region11: #{tpu_custom_call.1} parent=1 // pred_check_branch
      %33 = sbr.rel (0) target = $region13
    $region12: #{tpu_custom_call.1} parent=1 // pred_region
      %35 = dma.done [#allocation3], 256
    $region13: #{tpu_custom_call.1} parent=1 // pred_fallthru
      _
    // Predicated region
    $region14: #{tpu_custom_call.1} parent=1 // pred_check
      _
    $region15: #{tpu_custom_call.1} parent=1 // pred_check_branch
      %37 = sbr.rel (0) target = $region17
    $region16: #{tpu_custom_call.1} parent=1 // pred_region
      %39 = dma.done [#allocation6], 256
    $region17: #{tpu_custom_call.1} parent=1 // pred_fallthru
      _
    %p40 = scmp.eq.s32.totalorder 0, 0
    // Predicated region
    $region18: #{tpu_custom_call.1} parent=1 // pred_check
      %p41 = pneg %p40
    $region19: #{tpu_custom_call.1} parent=1 // pred_check_branch
      %43 = sbr.rel (%p41) target = $region21
    $region20: #{tpu_custom_call.1} parent=1 // pred_region
      %44 = vst [vmem:[#allocation7] sm:$0xff] 0.0
      %45 = vst [vmem:[#allocation7 + $0x8] sm:$0xff] 0.0
    $region21: #{tpu_custom_call.1} parent=1 // pred_fallthru
      _
    %v46 = vld [vmem:[#allocation7] sm:$0xff]
    %v47 = vld [vmem:[#allocation7 + $0x8] sm:$0xff]
    %s48 = smul.u32 0, 2
    %s49 = smul.addr %s48, 8
    %s50 = scalar_lea.vmem [#allocation2], %s49
    %v51 = vld [vmem:[%s50] sm:$0xff]
    %v52 = vld [vmem:[%s50 + $0x8] sm:$0xff]
    %s53 = smul.addr %s48, 8
    %s54 = scalar_lea.vmem [#allocation5], %s53
    %v55 = vld [vmem:[%s54] sm:$0xff]
    %v56 = vld [vmem:[%s54 + $0x8] sm:$0xff]
    %v57 = vsub.f32 %v51, %v55
    %v58 = vsub.f32 %v52, %v56
    %v59 = vmul.f32 %v57, %v57
    %v60 = vmul.f32 %v58, %v58
    %v61 = vadd.f32 %v46, %v59
    %v62 = vadd.f32 %v47, %v60
    %63 = vst [vmem:[#allocation7] sm:$0xff] %v61
    %64 = vst [vmem:[#allocation7 + $0x8] sm:$0xff] %v62
    // Predicated region
    $region22: #{tpu_custom_call.1} parent=1 // pred_check
      _
    $region23: #{tpu_custom_call.1} parent=1 // pred_check_branch
      %66 = sbr.rel (0) target = $region25
    $region24: #{tpu_custom_call.1} parent=1 // pred_region
      %68 = vsyncadd [#allocation4], 0
      %s70 = sshll.u32 [#allocation7], 4
      %s71 = int_to_ptr.vmem [resolvable:$true] %s70
      %s72 = sshll.u32 %s2, 4
      %s73 = int_to_ptr.hbm [resolvable:$true] %s72
      %75 = dma.vmem_to_hbm [thread:$0]  %s71, 256, %s73, [#allocation4]
    $region25: #{tpu_custom_call.1} parent=1 // pred_fallthru
      _
    // Predicated region
    $region26: #{tpu_custom_call.1} parent=1 // pred_check
      _
    $region27: #{tpu_custom_call.1} parent=1 // pred_check_branch
      %77 = sbr.rel (0) target = $region29
    $region28: #{tpu_custom_call.1} parent=1 // pred_region
      %79 = dma.done [#allocation4], 256
    $region29: #{tpu_custom_call.1} parent=1 // pred_fallthru
      _
    %80 = vsyncpa [#allocation3], 1
    %81 = vsyncpa [#allocation6], 1
    %82 = vsyncpa [#allocation4], 1

</llo_original>
